<compile_context>
chip_gen: v7x
topology: tpu7x:2x2x1
jax: 0.10.0
libtpu: 0.0.40
codegen_flags: <defaults>
</compile_context>

<pallas_src>
import functools

import jax
import jax.numpy as jnp
from jax import lax
from jax.experimental import pallas as pl
from jax.experimental.pallas import tpu as pltpu


def _row_copy(src_hbm, dst_vmem, sem, src_row, dst_row):
    """DMA descriptor for one (1, D) row: src_hbm[src_row] -> dst_vmem[dst_row]."""
    return pltpu.make_async_copy(
        src_hbm.at[pl.ds(src_row, 1), :],
        dst_vmem.at[pl.ds(dst_row, 1), :],
        sem.at[dst_row],
    )


def _infonce_kernel(pos_idx_ref, neg_idx_ref,   # scalar-prefetch (SMEM, int32)
                    concat_ref,                 # (N, D) left in HBM (pl.ANY)
                    out_ref,                    # (1, 1) scalar output in SMEM
                    pos_buf, neg_buf,           # VMEM scratch (P, D), (Q, D)
                    pos_sem, neg_sem,           # DMA completion semaphores
                    *, inv_tau):
    p = pos_buf.shape[0]
    q = neg_buf.shape[0]

    # ---- Indexed row gather: DMA only the P + Q selected rows from HBM. ----
    for i in range(p):
        _row_copy(concat_ref, pos_buf, pos_sem, pos_idx_ref[i], i).start()
    for j in range(q):
        _row_copy(concat_ref, neg_buf, neg_sem, neg_idx_ref[j], j).start()
    for i in range(p):
        _row_copy(concat_ref, pos_buf, pos_sem, 0, i).wait()
    for j in range(q):
        _row_copy(concat_ref, neg_buf, neg_sem, 0, j).wait()

    # ---- Gather-then-softmax (softmax is row-wise, so order commutes). ----
    def row_softmax(rows):
        z = rows.astype(jnp.float32) * inv_tau          # fold 1/tau into a multiply
        z = z - jnp.max(z, axis=1, keepdims=True)        # numerically stable
        e = jnp.exp(z)
        return e * pl.reciprocal(jnp.sum(e, axis=1, keepdims=True), approx=False)

    pos_soft = row_softmax(pos_buf[...])                 # (P, D) f32
    neg_soft = row_softmax(neg_buf[...])                 # (Q, D) f32

    # (P, D) x (Q, D) contracting the D axes directly (no explicit transpose).
    dot = lax.dot_general(
        pos_soft, neg_soft,
        dimension_numbers=(((1,), (1,)), ((), ())),
        preferred_element_type=jnp.float32)              # (P, Q)

    out_ref[0, 0] = -jnp.mean(jnp.log(dot + 1e-8))


def infonce_loss(concatenated, pos_indices, neg_indices, tau=1.0):
    """Pallas wrapper. concatenated: (N, D) float; pos/neg_indices: 1-D int."""
    n, d = concatenated.shape
    pos_idx = pos_indices.astype(jnp.int32).reshape(-1)
    neg_idx = neg_indices.astype(jnp.int32).reshape(-1)
    p = pos_idx.shape[0]
    q = neg_idx.shape[0]

    grid_spec = pltpu.PrefetchScalarGridSpec(
        num_scalar_prefetch=2,                 # pos_idx, neg_idx -> SMEM
        grid=(1,),
        in_specs=[pl.BlockSpec(memory_space=pl.ANY)],   # concatenated stays in HBM
        out_specs=pl.BlockSpec(memory_space=pltpu.MemorySpace.SMEM),
        scratch_shapes=[
            pltpu.VMEM((p, d), concatenated.dtype),     # gathered positive rows
            pltpu.VMEM((q, d), concatenated.dtype),     # gathered negative rows
            pltpu.SemaphoreType.DMA((p,)),
            pltpu.SemaphoreType.DMA((q,)),
        ],
    )

    out = pl.pallas_call(
        functools.partial(_infonce_kernel, inv_tau=float(1.0 / tau)),
        out_shape=jax.ShapeDtypeStruct((1, 1), jnp.float32),
        grid_spec=grid_spec,
        compiler_params=pltpu.CompilerParams(
            dimension_semantics=("arbitrary",)),
    )(pos_idx, neg_idx, concatenated)
    return out[0, 0]


def _reference_loss(concatenated, pos_indices, neg_indices, tau=1.0):
    """Pure-JAX reference mirroring the PyTorch forward exactly."""
    soft = jax.nn.softmax(concatenated.astype(jnp.float32) / tau, axis=1)
    pos = soft[pos_indices]
    neg = soft[neg_indices]
    dot = pos @ neg.T
    return -jnp.mean(jnp.log(dot + 1e-8))


if __name__ == "__main__":
    key = jax.random.PRNGKey(0)
    k1, k2, k3 = jax.random.split(key, 3)

    # Lane-dense (D multiple of 128) / sublane-dense (P, Q multiples of 8) shapes.
    N, D = 64, 128    # concatenated: (N, D)
    P, Q = 8, 8       # number of positive / negative rows selected

    concatenated = jax.random.normal(k1, (N, D), dtype=jnp.float32)
    pos_indices = jax.random.randint(k2, (P,), 0, N, dtype=jnp.int32)
    neg_indices = jax.random.randint(k3, (Q,), 0, N, dtype=jnp.int32)

    loss = infonce_loss(concatenated, pos_indices, neg_indices, tau=1.0)
    loss = jax.block_until_ready(loss)

    ref = _reference_loss(concatenated, pos_indices, neg_indices, tau=1.0)
    assert jnp.allclose(loss, ref, rtol=1e-5, atol=1e-5), (loss, ref)

    print("KERNEL_OK")
</pallas_src>

<mosaic_0001>
module attributes {stable_mosaic.version = 11 : i64} {
  func.func @_infonce_kernel(%arg0: i32, %arg1: memref<8xi32, #tpu.memory_space<smem>>, %arg2: memref<8xi32, #tpu.memory_space<smem>>, %arg3: memref<64x128xf32, #tpu.memory_space<any>>, %arg4: memref<1x1xf32, #tpu.memory_space<smem>>, %arg5: memref<8x128xf32, #tpu.memory_space<vmem>>, %arg6: memref<8x128xf32, #tpu.memory_space<vmem>>, %arg7: memref<8x!tpu.dma_semaphore, #tpu.memory_space<semaphore_mem>>, %arg8: memref<8x!tpu.dma_semaphore, #tpu.memory_space<semaphore_mem>>) attributes {dimension_semantics = [#tpu.dimension_semantics<arbitrary>], iteration_bounds = array<i64: 1>, scalar_prefetch = 2 : i64, scratch_operands = 4 : i64, tpu.core_type = #tpu.core_type<tc>, window_params = [{}, {transform_indices = @transform_1, window_bounds = array<i64: 1, 1>}]} {
    %c0 = arith.constant 0 : index
    %0 = memref.load %arg1[%c0] : memref<8xi32, #tpu.memory_space<smem>>
    %c0_i32 = arith.constant 0 : i32
    %c0_i32_0 = arith.constant 0 : i32
    %1 = tpu.memref_slice %arg3[%0, %c0_i32_0] : memref<64x128xf32, #tpu.memory_space<any>> -> memref<1x128xf32, #tpu.memory_space<any>>
    %c0_i32_1 = arith.constant 0 : i32
    %c0_i32_2 = arith.constant 0 : i32
    %2 = tpu.memref_slice %arg5[%c0_i32_1, %c0_i32_2] : memref<8x128xf32, #tpu.memory_space<vmem>> -> memref<1x128xf32, #tpu.memory_space<vmem>>
    %3 = tpu.memref_slice %arg7[%c0_i32] : memref<8x!tpu.dma_semaphore, #tpu.memory_space<semaphore_mem>> -> memref<1x!tpu.dma_semaphore, #tpu.memory_space<semaphore_mem>>
    %4 = tpu.memref_squeeze %3 : memref<1x!tpu.dma_semaphore, #tpu.memory_space<semaphore_mem>> -> memref<!tpu.dma_semaphore, #tpu.memory_space<semaphore_mem>>
    tpu.enqueue_dma source(%1 : memref<1x128xf32, #tpu.memory_space<any>>) target(%2 : memref<1x128xf32, #tpu.memory_space<vmem>>) target_semaphore(%4 : memref<!tpu.dma_semaphore, #tpu.memory_space<semaphore_mem>>)
    %c1 = arith.constant 1 : index
    %5 = memref.load %arg1[%c1] : memref<8xi32, #tpu.memory_space<smem>>
    %c1_i32 = arith.constant 1 : i32
    %c0_i32_3 = arith.constant 0 : i32
    %6 = tpu.memref_slice %arg3[%5, %c0_i32_3] : memref<64x128xf32, #tpu.memory_space<any>> -> memref<1x128xf32, #tpu.memory_space<any>>
    %c1_i32_4 = arith.constant 1 : i32
    %c0_i32_5 = arith.constant 0 : i32
    %7 = tpu.memref_slice %arg5[%c1_i32_4, %c0_i32_5] : memref<8x128xf32, #tpu.memory_space<vmem>> -> memref<1x128xf32, #tpu.memory_space<vmem>>
    %8 = tpu.memref_slice %arg7[%c1_i32] : memref<8x!tpu.dma_semaphore, #tpu.memory_space<semaphore_mem>> -> memref<1x!tpu.dma_semaphore, #tpu.memory_space<semaphore_mem>>
    %9 = tpu.memref_squeeze %8 : memref<1x!tpu.dma_semaphore, #tpu.memory_space<semaphore_mem>> -> memref<!tpu.dma_semaphore, #tpu.memory_space<semaphore_mem>>
    tpu.enqueue_dma source(%6 : memref<1x128xf32, #tpu.memory_space<any>>) target(%7 : memref<1x128xf32, #tpu.memory_space<vmem>>) target_semaphore(%9 : memref<!tpu.dma_semaphore, #tpu.memory_space<semaphore_mem>>)
    %c2 = arith.constant 2 : index
    %10 = memref.load %arg1[%c2] : memref<8xi32, #tpu.memory_space<smem>>
    %c2_i32 = arith.constant 2 : i32
    %c0_i32_6 = arith.constant 0 : i32
    %11 = tpu.memref_slice %arg3[%10, %c0_i32_6] : memref<64x128xf32, #tpu.memory_space<any>> -> memref<1x128xf32, #tpu.memory_space<any>>
    %c2_i32_7 = arith.constant 2 : i32
    %c0_i32_8 = arith.constant 0 : i32
    %12 = tpu.memref_slice %arg5[%c2_i32_7, %c0_i32_8] : memref<8x128xf32, #tpu.memory_space<vmem>> -> memref<1x128xf32, #tpu.memory_space<vmem>>
    %13 = tpu.memref_slice %arg7[%c2_i32] : memref<8x!tpu.dma_semaphore, #tpu.memory_space<semaphore_mem>> -> memref<1x!tpu.dma_semaphore, #tpu.memory_space<semaphore_mem>>
    %14 = tpu.memref_squeeze %13 : memref<1x!tpu.dma_semaphore, #tpu.memory_space<semaphore_mem>> -> memref<!tpu.dma_semaphore, #tpu.memory_space<semaphore_mem>>
    tpu.enqueue_dma source(%11 : memref<1x128xf32, #tpu.memory_space<any>>) target(%12 : memref<1x128xf32, #tpu.memory_space<vmem>>) target_semaphore(%14 : memref<!tpu.dma_semaphore, #tpu.memory_space<semaphore_mem>>)
    %c3 = arith.constant 3 : index
    %15 = memref.load %arg1[%c3] : memref<8xi32, #tpu.memory_space<smem>>
    %c3_i32 = arith.constant 3 : i32
    %c0_i32_9 = arith.constant 0 : i32
    %16 = tpu.memref_slice %arg3[%15, %c0_i32_9] : memref<64x128xf32, #tpu.memory_space<any>> -> memref<1x128xf32, #tpu.memory_space<any>>
    %c3_i32_10 = arith.constant 3 : i32
    %c0_i32_11 = arith.constant 0 : i32
    %17 = tpu.memref_slice %arg5[%c3_i32_10, %c0_i32_11] : memref<8x128xf32, #tpu.memory_space<vmem>> -> memref<1x128xf32, #tpu.memory_space<vmem>>
    %18 = tpu.memref_slice %arg7[%c3_i32] : memref<8x!tpu.dma_semaphore, #tpu.memory_space<semaphore_mem>> -> memref<1x!tpu.dma_semaphore, #tpu.memory_space<semaphore_mem>>
    %19 = tpu.memref_squeeze %18 : memref<1x!tpu.dma_semaphore, #tpu.memory_space<semaphore_mem>> -> memref<!tpu.dma_semaphore, #tpu.memory_space<semaphore_mem>>
    tpu.enqueue_dma source(%16 : memref<1x128xf32, #tpu.memory_space<any>>) target(%17 : memref<1x128xf32, #tpu.memory_space<vmem>>) target_semaphore(%19 : memref<!tpu.dma_semaphore, #tpu.memory_space<semaphore_mem>>)
    %c4 = arith.constant 4 : index
    %20 = memref.load %arg1[%c4] : memref<8xi32, #tpu.memory_space<smem>>
    %c4_i32 = arith.constant 4 : i32
    %c0_i32_12 = arith.constant 0 : i32
    %21 = tpu.memref_slice %arg3[%20, %c0_i32_12] : memref<64x128xf32, #tpu.memory_space<any>> -> memref<1x128xf32, #tpu.memory_space<any>>
    %c4_i32_13 = arith.constant 4 : i32
    %c0_i32_14 = arith.constant 0 : i32
    %22 = tpu.memref_slice %arg5[%c4_i32_13, %c0_i32_14] : memref<8x128xf32, #tpu.memory_space<vmem>> -> memref<1x128xf32, #tpu.memory_space<vmem>>
    %23 = tpu.memref_slice %arg7[%c4_i32] : memref<8x!tpu.dma_semaphore, #tpu.memory_space<semaphore_mem>> -> memref<1x!tpu.dma_semaphore, #tpu.memory_space<semaphore_mem>>
    %24 = tpu.memref_squeeze %23 : memref<1x!tpu.dma_semaphore, #tpu.memory_space<semaphore_mem>> -> memref<!tpu.dma_semaphore, #tpu.memory_space<semaphore_mem>>
    tpu.enqueue_dma source(%21 : memref<1x128xf32, #tpu.memory_space<any>>) target(%22 : memref<1x128xf32, #tpu.memory_space<vmem>>) target_semaphore(%24 : memref<!tpu.dma_semaphore, #tpu.memory_space<semaphore_mem>>)
    %c5 = arith.constant 5 : index
    %25 = memref.load %arg1[%c5] : memref<8xi32, #tpu.memory_space<smem>>
    %c5_i32 = arith.constant 5 : i32
    %c0_i32_15 = arith.constant 0 : i32
    %26 = tpu.memref_slice %arg3[%25, %c0_i32_15] : memref<64x128xf32, #tpu.memory_space<any>> -> memref<1x128xf32, #tpu.memory_space<any>>
    %c5_i32_16 = arith.constant 5 : i32
    %c0_i32_17 = arith.constant 0 : i32
    %27 = tpu.memref_slice %arg5[%c5_i32_16, %c0_i32_17] : memref<8x128xf32, #tpu.memory_space<vmem>> -> memref<1x128xf32, #tpu.memory_space<vmem>>
    %28 = tpu.memref_slice %arg7[%c5_i32] : memref<8x!tpu.dma_semaphore, #tpu.memory_space<semaphore_mem>> -> memref<1x!tpu.dma_semaphore, #tpu.memory_space<semaphore_mem>>
    %29 = tpu.memref_squeeze %28 : memref<1x!tpu.dma_semaphore, #tpu.memory_space<semaphore_mem>> -> memref<!tpu.dma_semaphore, #tpu.memory_space<semaphore_mem>>
    tpu.enqueue_dma source(%26 : memref<1x128xf32, #tpu.memory_space<any>>) target(%27 : memref<1x128xf32, #tpu.memory_space<vmem>>) target_semaphore(%29 : memref<!tpu.dma_semaphore, #tpu.memory_space<semaphore_mem>>)
    %c6 = arith.constant 6 : index
    %30 = memref.load %arg1[%c6] : memref<8xi32, #tpu.memory_space<smem>>
    %c6_i32 = arith.constant 6 : i32
    %c0_i32_18 = arith.constant 0 : i32
    %31 = tpu.memref_slice %arg3[%30, %c0_i32_18] : memref<64x128xf32, #tpu.memory_space<any>> -> memref<1x128xf32, #tpu.memory_space<any>>
    %c6_i32_19 = arith.constant 6 : i32
    %c0_i32_20 = arith.constant 0 : i32
    %32 = tpu.memref_slice %arg5[%c6_i32_19, %c0_i32_20] : memref<8x128xf32, #tpu.memory_space<vmem>> -> memref<1x128xf32, #tpu.memory_space<vmem>>
    %33 = tpu.memref_slice %arg7[%c6_i32] : memref<8x!tpu.dma_semaphore, #tpu.memory_space<semaphore_mem>> -> memref<1x!tpu.dma_semaphore, #tpu.memory_space<semaphore_mem>>
    %34 = tpu.memref_squeeze %33 : memref<1x!tpu.dma_semaphore, #tpu.memory_space<semaphore_mem>> -> memref<!tpu.dma_semaphore, #tpu.memory_space<semaphore_mem>>
    tpu.enqueue_dma source(%31 : memref<1x128xf32, #tpu.memory_space<any>>) target(%32 : memref<1x128xf32, #tpu.memory_space<vmem>>) target_semaphore(%34 : memref<!tpu.dma_semaphore, #tpu.memory_space<semaphore_mem>>)
    %c7 = arith.constant 7 : index
    %35 = memref.load %arg1[%c7] : memref<8xi32, #tpu.memory_space<smem>>
    %c7_i32 = arith.constant 7 : i32
    %c0_i32_21 = arith.constant 0 : i32
    %36 = tpu.memref_slice %arg3[%35, %c0_i32_21] : memref<64x128xf32, #tpu.memory_space<any>> -> memref<1x128xf32, #tpu.memory_space<any>>
    %c7_i32_22 = arith.constant 7 : i32
    %c0_i32_23 = arith.constant 0 : i32
    %37 = tpu.memref_slice %arg5[%c7_i32_22, %c0_i32_23] : memref<8x128xf32, #tpu.memory_space<vmem>> -> memref<1x128xf32, #tpu.memory_space<vmem>>
    %38 = tpu.memref_slice %arg7[%c7_i32] : memref<8x!tpu.dma_semaphore, #tpu.memory_space<semaphore_mem>> -> memref<1x!tpu.dma_semaphore, #tpu.memory_space<semaphore_mem>>
    %39 = tpu.memref_squeeze %38 : memref<1x!tpu.dma_semaphore, #tpu.memory_space<semaphore_mem>> -> memref<!tpu.dma_semaphore, #tpu.memory_space<semaphore_mem>>
    tpu.enqueue_dma source(%36 : memref<1x128xf32, #tpu.memory_space<any>>) target(%37 : memref<1x128xf32, #tpu.memory_space<vmem>>) target_semaphore(%39 : memref<!tpu.dma_semaphore, #tpu.memory_space<semaphore_mem>>)
    %c0_24 = arith.constant 0 : index
    %40 = memref.load %arg2[%c0_24] : memref<8xi32, #tpu.memory_space<smem>>
    %c0_i32_25 = arith.constant 0 : i32
    %c0_i32_26 = arith.constant 0 : i32
    %41 = tpu.memref_slice %arg3[%40, %c0_i32_26] : memref<64x128xf32, #tpu.memory_space<any>> -> memref<1x128xf32, #tpu.memory_space<any>>
    %c0_i32_27 = arith.constant 0 : i32
    %c0_i32_28 = arith.constant 0 : i32
    %42 = tpu.memref_slice %arg6[%c0_i32_27, %c0_i32_28] : memref<8x128xf32, #tpu.memory_space<vmem>> -> memref<1x128xf32, #tpu.memory_space<vmem>>
    %43 = tpu.memref_slice %arg8[%c0_i32_25] : memref<8x!tpu.dma_semaphore, #tpu.memory_space<semaphore_mem>> -> memref<1x!tpu.dma_semaphore, #tpu.memory_space<semaphore_mem>>
    %44 = tpu.memref_squeeze %43 : memref<1x!tpu.dma_semaphore, #tpu.memory_space<semaphore_mem>> -> memref<!tpu.dma_semaphore, #tpu.memory_space<semaphore_mem>>
    tpu.enqueue_dma source(%41 : memref<1x128xf32, #tpu.memory_space<any>>) target(%42 : memref<1x128xf32, #tpu.memory_space<vmem>>) target_semaphore(%44 : memref<!tpu.dma_semaphore, #tpu.memory_space<semaphore_mem>>)
    %c1_29 = arith.constant 1 : index
    %45 = memref.load %arg2[%c1_29] : memref<8xi32, #tpu.memory_space<smem>>
    %c1_i32_30 = arith.constant 1 : i32
    %c0_i32_31 = arith.constant 0 : i32
    %46 = tpu.memref_slice %arg3[%45, %c0_i32_31] : memref<64x128xf32, #tpu.memory_space<any>> -> memref<1x128xf32, #tpu.memory_space<any>>
    %c1_i32_32 = arith.constant 1 : i32
    %c0_i32_33 = arith.constant 0 : i32
    %47 = tpu.memref_slice %arg6[%c1_i32_32, %c0_i32_33] : memref<8x128xf32, #tpu.memory_space<vmem>> -> memref<1x128xf32, #tpu.memory_space<vmem>>
    %48 = tpu.memref_slice %arg8[%c1_i32_30] : memref<8x!tpu.dma_semaphore, #tpu.memory_space<semaphore_mem>> -> memref<1x!tpu.dma_semaphore, #tpu.memory_space<semaphore_mem>>
    %49 = tpu.memref_squeeze %48 : memref<1x!tpu.dma_semaphore, #tpu.memory_space<semaphore_mem>> -> memref<!tpu.dma_semaphore, #tpu.memory_space<semaphore_mem>>
    tpu.enqueue_dma source(%46 : memref<1x128xf32, #tpu.memory_space<any>>) target(%47 : memref<1x128xf32, #tpu.memory_space<vmem>>) target_semaphore(%49 : memref<!tpu.dma_semaphore, #tpu.memory_space<semaphore_mem>>)
    %c2_34 = arith.constant 2 : index
    %50 = memref.load %arg2[%c2_34] : memref<8xi32, #tpu.memory_space<smem>>
    %c2_i32_35 = arith.constant 2 : i32
    %c0_i32_36 = arith.constant 0 : i32
    %51 = tpu.memref_slice %arg3[%50, %c0_i32_36] : memref<64x128xf32, #tpu.memory_space<any>> -> memref<1x128xf32, #tpu.memory_space<any>>
    %c2_i32_37 = arith.constant 2 : i32
    %c0_i32_38 = arith.constant 0 : i32
    %52 = tpu.memref_slice %arg6[%c2_i32_37, %c0_i32_38] : memref<8x128xf32, #tpu.memory_space<vmem>> -> memref<1x128xf32, #tpu.memory_space<vmem>>
    %53 = tpu.memref_slice %arg8[%c2_i32_35] : memref<8x!tpu.dma_semaphore, #tpu.memory_space<semaphore_mem>> -> memref<1x!tpu.dma_semaphore, #tpu.memory_space<semaphore_mem>>
    %54 = tpu.memref_squeeze %53 : memref<1x!tpu.dma_semaphore, #tpu.memory_space<semaphore_mem>> -> memref<!tpu.dma_semaphore, #tpu.memory_space<semaphore_mem>>
    tpu.enqueue_dma source(%51 : memref<1x128xf32, #tpu.memory_space<any>>) target(%52 : memref<1x128xf32, #tpu.memory_space<vmem>>) target_semaphore(%54 : memref<!tpu.dma_semaphore, #tpu.memory_space<semaphore_mem>>)
    %c3_39 = arith.constant 3 : index
    %55 = memref.load %arg2[%c3_39] : memref<8xi32, #tpu.memory_space<smem>>
    %c3_i32_40 = arith.constant 3 : i32
    %c0_i32_41 = arith.constant 0 : i32
    %56 = tpu.memref_slice %arg3[%55, %c0_i32_41] : memref<64x128xf32, #tpu.memory_space<any>> -> memref<1x128xf32, #tpu.memory_space<any>>
    %c3_i32_42 = arith.constant 3 : i32
    %c0_i32_43 = arith.constant 0 : i32
    %57 = tpu.memref_slice %arg6[%c3_i32_42, %c0_i32_43] : memref<8x128xf32, #tpu.memory_space<vmem>> -> memref<1x128xf32, #tpu.memory_space<vmem>>
    %58 = tpu.memref_slice %arg8[%c3_i32_40] : memref<8x!tpu.dma_semaphore, #tpu.memory_space<semaphore_mem>> -> memref<1x!tpu.dma_semaphore, #tpu.memory_space<semaphore_mem>>
    %59 = tpu.memref_squeeze %58 : memref<1x!tpu.dma_semaphore, #tpu.memory_space<semaphore_mem>> -> memref<!tpu.dma_semaphore, #tpu.memory_space<semaphore_mem>>
    tpu.enqueue_dma source(%56 : memref<1x128xf32, #tpu.memory_space<any>>) target(%57 : memref<1x128xf32, #tpu.memory_space<vmem>>) target_semaphore(%59 : memref<!tpu.dma_semaphore, #tpu.memory_space<semaphore_mem>>)
    %c4_44 = arith.constant 4 : index
    %60 = memref.load %arg2[%c4_44] : memref<8xi32, #tpu.memory_space<smem>>
    %c4_i32_45 = arith.constant 4 : i32
    %c0_i32_46 = arith.constant 0 : i32
    %61 = tpu.memref_slice %arg3[%60, %c0_i32_46] : memref<64x128xf32, #tpu.memory_space<any>> -> memref<1x128xf32, #tpu.memory_space<any>>
    %c4_i32_47 = arith.constant 4 : i32
    %c0_i32_48 = arith.constant 0 : i32
    %62 = tpu.memref_slice %arg6[%c4_i32_47, %c0_i32_48] : memref<8x128xf32, #tpu.memory_space<vmem>> -> memref<1x128xf32, #tpu.memory_space<vmem>>
    %63 = tpu.memref_slice %arg8[%c4_i32_45] : memref<8x!tpu.dma_semaphore, #tpu.memory_space<semaphore_mem>> -> memref<1x!tpu.dma_semaphore, #tpu.memory_space<semaphore_mem>>
    %64 = tpu.memref_squeeze %63 : memref<1x!tpu.dma_semaphore, #tpu.memory_space<semaphore_mem>> -> memref<!tpu.dma_semaphore, #tpu.memory_space<semaphore_mem>>
    tpu.enqueue_dma source(%61 : memref<1x128xf32, #tpu.memory_space<any>>) target(%62 : memref<1x128xf32, #tpu.memory_space<vmem>>) target_semaphore(%64 : memref<!tpu.dma_semaphore, #tpu.memory_space<semaphore_mem>>)
    %c5_49 = arith.constant 5 : index
    %65 = memref.load %arg2[%c5_49] : memref<8xi32, #tpu.memory_space<smem>>
    %c5_i32_50 = arith.constant 5 : i32
    %c0_i32_51 = arith.constant 0 : i32
    %66 = tpu.memref_slice %arg3[%65, %c0_i32_51] : memref<64x128xf32, #tpu.memory_space<any>> -> memref<1x128xf32, #tpu.memory_space<any>>
    %c5_i32_52 = arith.constant 5 : i32
    %c0_i32_53 = arith.constant 0 : i32
    %67 = tpu.memref_slice %arg6[%c5_i32_52, %c0_i32_53] : memref<8x128xf32, #tpu.memory_space<vmem>> -> memref<1x128xf32, #tpu.memory_space<vmem>>
    %68 = tpu.memref_slice %arg8[%c5_i32_50] : memref<8x!tpu.dma_semaphore, #tpu.memory_space<semaphore_mem>> -> memref<1x!tpu.dma_semaphore, #tpu.memory_space<semaphore_mem>>
    %69 = tpu.memref_squeeze %68 : memref<1x!tpu.dma_semaphore, #tpu.memory_space<semaphore_mem>> -> memref<!tpu.dma_semaphore, #tpu.memory_space<semaphore_mem>>
    tpu.enqueue_dma source(%66 : memref<1x128xf32, #tpu.memory_space<any>>) target(%67 : memref<1x128xf32, #tpu.memory_space<vmem>>) target_semaphore(%69 : memref<!tpu.dma_semaphore, #tpu.memory_space<semaphore_mem>>)
    %c6_54 = arith.constant 6 : index
    %70 = memref.load %arg2[%c6_54] : memref<8xi32, #tpu.memory_space<smem>>
    %c6_i32_55 = arith.constant 6 : i32
    %c0_i32_56 = arith.constant 0 : i32
    %71 = tpu.memref_slice %arg3[%70, %c0_i32_56] : memref<64x128xf32, #tpu.memory_space<any>> -> memref<1x128xf32, #tpu.memory_space<any>>
    %c6_i32_57 = arith.constant 6 : i32
    %c0_i32_58 = arith.constant 0 : i32
    %72 = tpu.memref_slice %arg6[%c6_i32_57, %c0_i32_58] : memref<8x128xf32, #tpu.memory_space<vmem>> -> memref<1x128xf32, #tpu.memory_space<vmem>>
    %73 = tpu.memref_slice %arg8[%c6_i32_55] : memref<8x!tpu.dma_semaphore, #tpu.memory_space<semaphore_mem>> -> memref<1x!tpu.dma_semaphore, #tpu.memory_space<semaphore_mem>>
    %74 = tpu.memref_squeeze %73 : memref<1x!tpu.dma_semaphore, #tpu.memory_space<semaphore_mem>> -> memref<!tpu.dma_semaphore, #tpu.memory_space<semaphore_mem>>
    tpu.enqueue_dma source(%71 : memref<1x128xf32, #tpu.memory_space<any>>) target(%72 : memref<1x128xf32, #tpu.memory_space<vmem>>) target_semaphore(%74 : memref<!tpu.dma_semaphore, #tpu.memory_space<semaphore_mem>>)
    %c7_59 = arith.constant 7 : index
    %75 = memref.load %arg2[%c7_59] : memref<8xi32, #tpu.memory_space<smem>>
    %c7_i32_60 = arith.constant 7 : i32
    %c0_i32_61 = arith.constant 0 : i32
    %76 = tpu.memref_slice %arg3[%75, %c0_i32_61] : memref<64x128xf32, #tpu.memory_space<any>> -> memref<1x128xf32, #tpu.memory_space<any>>
    %c7_i32_62 = arith.constant 7 : i32
    %c0_i32_63 = arith.constant 0 : i32
    %77 = tpu.memref_slice %arg6[%c7_i32_62, %c0_i32_63] : memref<8x128xf32, #tpu.memory_space<vmem>> -> memref<1x128xf32, #tpu.memory_space<vmem>>
    %78 = tpu.memref_slice %arg8[%c7_i32_60] : memref<8x!tpu.dma_semaphore, #tpu.memory_space<semaphore_mem>> -> memref<1x!tpu.dma_semaphore, #tpu.memory_space<semaphore_mem>>
    %79 = tpu.memref_squeeze %78 : memref<1x!tpu.dma_semaphore, #tpu.memory_space<semaphore_mem>> -> memref<!tpu.dma_semaphore, #tpu.memory_space<semaphore_mem>>
    tpu.enqueue_dma source(%76 : memref<1x128xf32, #tpu.memory_space<any>>) target(%77 : memref<1x128xf32, #tpu.memory_space<vmem>>) target_semaphore(%79 : memref<!tpu.dma_semaphore, #tpu.memory_space<semaphore_mem>>)
    %c0_i32_64 = arith.constant 0 : i32
    %c0_i32_65 = arith.constant 0 : i32
    %c0_i32_66 = arith.constant 0 : i32
    %80 = tpu.memref_slice %arg3[%c0_i32_65, %c0_i32_66] : memref<64x128xf32, #tpu.memory_space<any>> -> memref<1x128xf32, #tpu.memory_space<any>>
    %c0_i32_67 = arith.constant 0 : i32
    %c0_i32_68 = arith.constant 0 : i32
    %81 = tpu.memref_slice %arg5[%c0_i32_67, %c0_i32_68] : memref<8x128xf32, #tpu.memory_space<vmem>> -> memref<1x128xf32, #tpu.memory_space<vmem>>
    %82 = tpu.memref_slice %arg7[%c0_i32_64] : memref<8x!tpu.dma_semaphore, #tpu.memory_space<semaphore_mem>> -> memref<1x!tpu.dma_semaphore, #tpu.memory_space<semaphore_mem>>
    %83 = tpu.memref_squeeze %82 : memref<1x!tpu.dma_semaphore, #tpu.memory_space<semaphore_mem>> -> memref<!tpu.dma_semaphore, #tpu.memory_space<semaphore_mem>>
    tpu.wait_dma2 semaphore(%83 : memref<!tpu.dma_semaphore, #tpu.memory_space<semaphore_mem>>) src(%80 : memref<1x128xf32, #tpu.memory_space<any>>) dst(%81 : memref<1x128xf32, #tpu.memory_space<vmem>>)
    %c1_i32_69 = arith.constant 1 : i32
    %c0_i32_70 = arith.constant 0 : i32
    %c0_i32_71 = arith.constant 0 : i32
    %84 = tpu.memref_slice %arg3[%c0_i32_70, %c0_i32_71] : memref<64x128xf32, #tpu.memory_space<any>> -> memref<1x128xf32, #tpu.memory_space<any>>
    %c1_i32_72 = arith.constant 1 : i32
    %c0_i32_73 = arith.constant 0 : i32
    %85 = tpu.memref_slice %arg5[%c1_i32_72, %c0_i32_73] : memref<8x128xf32, #tpu.memory_space<vmem>> -> memref<1x128xf32, #tpu.memory_space<vmem>>
    %86 = tpu.memref_slice %arg7[%c1_i32_69] : memref<8x!tpu.dma_semaphore, #tpu.memory_space<semaphore_mem>> -> memref<1x!tpu.dma_semaphore, #tpu.memory_space<semaphore_mem>>
    %87 = tpu.memref_squeeze %86 : memref<1x!tpu.dma_semaphore, #tpu.memory_space<semaphore_mem>> -> memref<!tpu.dma_semaphore, #tpu.memory_space<semaphore_mem>>
    tpu.wait_dma2 semaphore(%87 : memref<!tpu.dma_semaphore, #tpu.memory_space<semaphore_mem>>) src(%84 : memref<1x128xf32, #tpu.memory_space<any>>) dst(%85 : memref<1x128xf32, #tpu.memory_space<vmem>>)
    %c2_i32_74 = arith.constant 2 : i32
    %c0_i32_75 = arith.constant 0 : i32
    %c0_i32_76 = arith.constant 0 : i32
    %88 = tpu.memref_slice %arg3[%c0_i32_75, %c0_i32_76] : memref<64x128xf32, #tpu.memory_space<any>> -> memref<1x128xf32, #tpu.memory_space<any>>
    %c2_i32_77 = arith.constant 2 : i32
    %c0_i32_78 = arith.constant 0 : i32
    %89 = tpu.memref_slice %arg5[%c2_i32_77, %c0_i32_78] : memref<8x128xf32, #tpu.memory_space<vmem>> -> memref<1x128xf32, #tpu.memory_space<vmem>>
    %90 = tpu.memref_slice %arg7[%c2_i32_74] : memref<8x!tpu.dma_semaphore, #tpu.memory_space<semaphore_mem>> -> memref<1x!tpu.dma_semaphore, #tpu.memory_space<semaphore_mem>>
    %91 = tpu.memref_squeeze %90 : memref<1x!tpu.dma_semaphore, #tpu.memory_space<semaphore_mem>> -> memref<!tpu.dma_semaphore, #tpu.memory_space<semaphore_mem>>
    tpu.wait_dma2 semaphore(%91 : memref<!tpu.dma_semaphore, #tpu.memory_space<semaphore_mem>>) src(%88 : memref<1x128xf32, #tpu.memory_space<any>>) dst(%89 : memref<1x128xf32, #tpu.memory_space<vmem>>)
    %c3_i32_79 = arith.constant 3 : i32
    %c0_i32_80 = arith.constant 0 : i32
    %c0_i32_81 = arith.constant 0 : i32
    %92 = tpu.memref_slice %arg3[%c0_i32_80, %c0_i32_81] : memref<64x128xf32, #tpu.memory_space<any>> -> memref<1x128xf32, #tpu.memory_space<any>>
    %c3_i32_82 = arith.constant 3 : i32
    %c0_i32_83 = arith.constant 0 : i32
    %93 = tpu.memref_slice %arg5[%c3_i32_82, %c0_i32_83] : memref<8x128xf32, #tpu.memory_space<vmem>> -> memref<1x128xf32, #tpu.memory_space<vmem>>
    %94 = tpu.memref_slice %arg7[%c3_i32_79] : memref<8x!tpu.dma_semaphore, #tpu.memory_space<semaphore_mem>> -> memref<1x!tpu.dma_semaphore, #tpu.memory_space<semaphore_mem>>
    %95 = tpu.memref_squeeze %94 : memref<1x!tpu.dma_semaphore, #tpu.memory_space<semaphore_mem>> -> memref<!tpu.dma_semaphore, #tpu.memory_space<semaphore_mem>>
    tpu.wait_dma2 semaphore(%95 : memref<!tpu.dma_semaphore, #tpu.memory_space<semaphore_mem>>) src(%92 : memref<1x128xf32, #tpu.memory_space<any>>) dst(%93 : memref<1x128xf32, #tpu.memory_space<vmem>>)
    %c4_i32_84 = arith.constant 4 : i32
    %c0_i32_85 = arith.constant 0 : i32
    %c0_i32_86 = arith.constant 0 : i32
    %96 = tpu.memref_slice %arg3[%c0_i32_85, %c0_i32_86] : memref<64x128xf32, #tpu.memory_space<any>> -> memref<1x128xf32, #tpu.memory_space<any>>
    %c4_i32_87 = arith.constant 4 : i32
    %c0_i32_88 = arith.constant 0 : i32
    %97 = tpu.memref_slice %arg5[%c4_i32_87, %c0_i32_88] : memref<8x128xf32, #tpu.memory_space<vmem>> -> memref<1x128xf32, #tpu.memory_space<vmem>>
    %98 = tpu.memref_slice %arg7[%c4_i32_84] : memref<8x!tpu.dma_semaphore, #tpu.memory_space<semaphore_mem>> -> memref<1x!tpu.dma_semaphore, #tpu.memory_space<semaphore_mem>>
    %99 = tpu.memref_squeeze %98 : memref<1x!tpu.dma_semaphore, #tpu.memory_space<semaphore_mem>> -> memref<!tpu.dma_semaphore, #tpu.memory_space<semaphore_mem>>
    tpu.wait_dma2 semaphore(%99 : memref<!tpu.dma_semaphore, #tpu.memory_space<semaphore_mem>>) src(%96 : memref<1x128xf32, #tpu.memory_space<any>>) dst(%97 : memref<1x128xf32, #tpu.memory_space<vmem>>)
    %c5_i32_89 = arith.constant 5 : i32
    %c0_i32_90 = arith.constant 0 : i32
    %c0_i32_91 = arith.constant 0 : i32
    %100 = tpu.memref_slice %arg3[%c0_i32_90, %c0_i32_91] : memref<64x128xf32, #tpu.memory_space<any>> -> memref<1x128xf32, #tpu.memory_space<any>>
    %c5_i32_92 = arith.constant 5 : i32
    %c0_i32_93 = arith.constant 0 : i32
    %101 = tpu.memref_slice %arg5[%c5_i32_92, %c0_i32_93] : memref<8x128xf32, #tpu.memory_space<vmem>> -> memref<1x128xf32, #tpu.memory_space<vmem>>
    %102 = tpu.memref_slice %arg7[%c5_i32_89] : memref<8x!tpu.dma_semaphore, #tpu.memory_space<semaphore_mem>> -> memref<1x!tpu.dma_semaphore, #tpu.memory_space<semaphore_mem>>
    %103 = tpu.memref_squeeze %102 : memref<1x!tpu.dma_semaphore, #tpu.memory_space<semaphore_mem>> -> memref<!tpu.dma_semaphore, #tpu.memory_space<semaphore_mem>>
    tpu.wait_dma2 semaphore(%103 : memref<!tpu.dma_semaphore, #tpu.memory_space<semaphore_mem>>) src(%100 : memref<1x128xf32, #tpu.memory_space<any>>) dst(%101 : memref<1x128xf32, #tpu.memory_space<vmem>>)
    %c6_i32_94 = arith.constant 6 : i32
    %c0_i32_95 = arith.constant 0 : i32
    %c0_i32_96 = arith.constant 0 : i32
    %104 = tpu.memref_slice %arg3[%c0_i32_95, %c0_i32_96] : memref<64x128xf32, #tpu.memory_space<any>> -> memref<1x128xf32, #tpu.memory_space<any>>
    %c6_i32_97 = arith.constant 6 : i32
    %c0_i32_98 = arith.constant 0 : i32
    %105 = tpu.memref_slice %arg5[%c6_i32_97, %c0_i32_98] : memref<8x128xf32, #tpu.memory_space<vmem>> -> memref<1x128xf32, #tpu.memory_space<vmem>>
    %106 = tpu.memref_slice %arg7[%c6_i32_94] : memref<8x!tpu.dma_semaphore, #tpu.memory_space<semaphore_mem>> -> memref<1x!tpu.dma_semaphore, #tpu.memory_space<semaphore_mem>>
    %107 = tpu.memref_squeeze %106 : memref<1x!tpu.dma_semaphore, #tpu.memory_space<semaphore_mem>> -> memref<!tpu.dma_semaphore, #tpu.memory_space<semaphore_mem>>
    tpu.wait_dma2 semaphore(%107 : memref<!tpu.dma_semaphore, #tpu.memory_space<semaphore_mem>>) src(%104 : memref<1x128xf32, #tpu.memory_space<any>>) dst(%105 : memref<1x128xf32, #tpu.memory_space<vmem>>)
    %c7_i32_99 = arith.constant 7 : i32
    %c0_i32_100 = arith.constant 0 : i32
    %c0_i32_101 = arith.constant 0 : i32
    %108 = tpu.memref_slice %arg3[%c0_i32_100, %c0_i32_101] : memref<64x128xf32, #tpu.memory_space<any>> -> memref<1x128xf32, #tpu.memory_space<any>>
    %c7_i32_102 = arith.constant 7 : i32
    %c0_i32_103 = arith.constant 0 : i32
    %109 = tpu.memref_slice %arg5[%c7_i32_102, %c0_i32_103] : memref<8x128xf32, #tpu.memory_space<vmem>> -> memref<1x128xf32, #tpu.memory_space<vmem>>
    %110 = tpu.memref_slice %arg7[%c7_i32_99] : memref<8x!tpu.dma_semaphore, #tpu.memory_space<semaphore_mem>> -> memref<1x!tpu.dma_semaphore, #tpu.memory_space<semaphore_mem>>
    %111 = tpu.memref_squeeze %110 : memref<1x!tpu.dma_semaphore, #tpu.memory_space<semaphore_mem>> -> memref<!tpu.dma_semaphore, #tpu.memory_space<semaphore_mem>>
    tpu.wait_dma2 semaphore(%111 : memref<!tpu.dma_semaphore, #tpu.memory_space<semaphore_mem>>) src(%108 : memref<1x128xf32, #tpu.memory_space<any>>) dst(%109 : memref<1x128xf32, #tpu.memory_space<vmem>>)
    %c0_i32_104 = arith.constant 0 : i32
    %c0_i32_105 = arith.constant 0 : i32
    %c0_i32_106 = arith.constant 0 : i32
    %112 = tpu.memref_slice %arg3[%c0_i32_105, %c0_i32_106] : memref<64x128xf32, #tpu.memory_space<any>> -> memref<1x128xf32, #tpu.memory_space<any>>
    %c0_i32_107 = arith.constant 0 : i32
    %c0_i32_108 = arith.constant 0 : i32
    %113 = tpu.memref_slice %arg6[%c0_i32_107, %c0_i32_108] : memref<8x128xf32, #tpu.memory_space<vmem>> -> memref<1x128xf32, #tpu.memory_space<vmem>>
    %114 = tpu.memref_slice %arg8[%c0_i32_104] : memref<8x!tpu.dma_semaphore, #tpu.memory_space<semaphore_mem>> -> memref<1x!tpu.dma_semaphore, #tpu.memory_space<semaphore_mem>>
    %115 = tpu.memref_squeeze %114 : memref<1x!tpu.dma_semaphore, #tpu.memory_space<semaphore_mem>> -> memref<!tpu.dma_semaphore, #tpu.memory_space<semaphore_mem>>
    tpu.wait_dma2 semaphore(%115 : memref<!tpu.dma_semaphore, #tpu.memory_space<semaphore_mem>>) src(%112 : memref<1x128xf32, #tpu.memory_space<any>>) dst(%113 : memref<1x128xf32, #tpu.memory_space<vmem>>)
    %c1_i32_109 = arith.constant 1 : i32
    %c0_i32_110 = arith.constant 0 : i32
    %c0_i32_111 = arith.constant 0 : i32
    %116 = tpu.memref_slice %arg3[%c0_i32_110, %c0_i32_111] : memref<64x128xf32, #tpu.memory_space<any>> -> memref<1x128xf32, #tpu.memory_space<any>>
    %c1_i32_112 = arith.constant 1 : i32
    %c0_i32_113 = arith.constant 0 : i32
    %117 = tpu.memref_slice %arg6[%c1_i32_112, %c0_i32_113] : memref<8x128xf32, #tpu.memory_space<vmem>> -> memref<1x128xf32, #tpu.memory_space<vmem>>
    %118 = tpu.memref_slice %arg8[%c1_i32_109] : memref<8x!tpu.dma_semaphore, #tpu.memory_space<semaphore_mem>> -> memref<1x!tpu.dma_semaphore, #tpu.memory_space<semaphore_mem>>
    %119 = tpu.memref_squeeze %118 : memref<1x!tpu.dma_semaphore, #tpu.memory_space<semaphore_mem>> -> memref<!tpu.dma_semaphore, #tpu.memory_space<semaphore_mem>>
    tpu.wait_dma2 semaphore(%119 : memref<!tpu.dma_semaphore, #tpu.memory_space<semaphore_mem>>) src(%116 : memref<1x128xf32, #tpu.memory_space<any>>) dst(%117 : memref<1x128xf32, #tpu.memory_space<vmem>>)
    %c2_i32_114 = arith.constant 2 : i32
    %c0_i32_115 = arith.constant 0 : i32
    %c0_i32_116 = arith.constant 0 : i32
    %120 = tpu.memref_slice %arg3[%c0_i32_115, %c0_i32_116] : memref<64x128xf32, #tpu.memory_space<any>> -> memref<1x128xf32, #tpu.memory_space<any>>
    %c2_i32_117 = arith.constant 2 : i32
    %c0_i32_118 = arith.constant 0 : i32
    %121 = tpu.memref_slice %arg6[%c2_i32_117, %c0_i32_118] : memref<8x128xf32, #tpu.memory_space<vmem>> -> memref<1x128xf32, #tpu.memory_space<vmem>>
    %122 = tpu.memref_slice %arg8[%c2_i32_114] : memref<8x!tpu.dma_semaphore, #tpu.memory_space<semaphore_mem>> -> memref<1x!tpu.dma_semaphore, #tpu.memory_space<semaphore_mem>>
    %123 = tpu.memref_squeeze %122 : memref<1x!tpu.dma_semaphore, #tpu.memory_space<semaphore_mem>> -> memref<!tpu.dma_semaphore, #tpu.memory_space<semaphore_mem>>
    tpu.wait_dma2 semaphore(%123 : memref<!tpu.dma_semaphore, #tpu.memory_space<semaphore_mem>>) src(%120 : memref<1x128xf32, #tpu.memory_space<any>>) dst(%121 : memref<1x128xf32, #tpu.memory_space<vmem>>)
    %c3_i32_119 = arith.constant 3 : i32
    %c0_i32_120 = arith.constant 0 : i32
    %c0_i32_121 = arith.constant 0 : i32
    %124 = tpu.memref_slice %arg3[%c0_i32_120, %c0_i32_121] : memref<64x128xf32, #tpu.memory_space<any>> -> memref<1x128xf32, #tpu.memory_space<any>>
    %c3_i32_122 = arith.constant 3 : i32
    %c0_i32_123 = arith.constant 0 : i32
    %125 = tpu.memref_slice %arg6[%c3_i32_122, %c0_i32_123] : memref<8x128xf32, #tpu.memory_space<vmem>> -> memref<1x128xf32, #tpu.memory_space<vmem>>
    %126 = tpu.memref_slice %arg8[%c3_i32_119] : memref<8x!tpu.dma_semaphore, #tpu.memory_space<semaphore_mem>> -> memref<1x!tpu.dma_semaphore, #tpu.memory_space<semaphore_mem>>
    %127 = tpu.memref_squeeze %126 : memref<1x!tpu.dma_semaphore, #tpu.memory_space<semaphore_mem>> -> memref<!tpu.dma_semaphore, #tpu.memory_space<semaphore_mem>>
    tpu.wait_dma2 semaphore(%127 : memref<!tpu.dma_semaphore, #tpu.memory_space<semaphore_mem>>) src(%124 : memref<1x128xf32, #tpu.memory_space<any>>) dst(%125 : memref<1x128xf32, #tpu.memory_space<vmem>>)
    %c4_i32_124 = arith.constant 4 : i32
    %c0_i32_125 = arith.constant 0 : i32
    %c0_i32_126 = arith.constant 0 : i32
    %128 = tpu.memref_slice %arg3[%c0_i32_125, %c0_i32_126] : memref<64x128xf32, #tpu.memory_space<any>> -> memref<1x128xf32, #tpu.memory_space<any>>
    %c4_i32_127 = arith.constant 4 : i32
    %c0_i32_128 = arith.constant 0 : i32
    %129 = tpu.memref_slice %arg6[%c4_i32_127, %c0_i32_128] : memref<8x128xf32, #tpu.memory_space<vmem>> -> memref<1x128xf32, #tpu.memory_space<vmem>>
    %130 = tpu.memref_slice %arg8[%c4_i32_124] : memref<8x!tpu.dma_semaphore, #tpu.memory_space<semaphore_mem>> -> memref<1x!tpu.dma_semaphore, #tpu.memory_space<semaphore_mem>>
    %131 = tpu.memref_squeeze %130 : memref<1x!tpu.dma_semaphore, #tpu.memory_space<semaphore_mem>> -> memref<!tpu.dma_semaphore, #tpu.memory_space<semaphore_mem>>
    tpu.wait_dma2 semaphore(%131 : memref<!tpu.dma_semaphore, #tpu.memory_space<semaphore_mem>>) src(%128 : memref<1x128xf32, #tpu.memory_space<any>>) dst(%129 : memref<1x128xf32, #tpu.memory_space<vmem>>)
    %c5_i32_129 = arith.constant 5 : i32
    %c0_i32_130 = arith.constant 0 : i32
    %c0_i32_131 = arith.constant 0 : i32
    %132 = tpu.memref_slice %arg3[%c0_i32_130, %c0_i32_131] : memref<64x128xf32, #tpu.memory_space<any>> -> memref<1x128xf32, #tpu.memory_space<any>>
    %c5_i32_132 = arith.constant 5 : i32
    %c0_i32_133 = arith.constant 0 : i32
    %133 = tpu.memref_slice %arg6[%c5_i32_132, %c0_i32_133] : memref<8x128xf32, #tpu.memory_space<vmem>> -> memref<1x128xf32, #tpu.memory_space<vmem>>
    %134 = tpu.memref_slice %arg8[%c5_i32_129] : memref<8x!tpu.dma_semaphore, #tpu.memory_space<semaphore_mem>> -> memref<1x!tpu.dma_semaphore, #tpu.memory_space<semaphore_mem>>
    %135 = tpu.memref_squeeze %134 : memref<1x!tpu.dma_semaphore, #tpu.memory_space<semaphore_mem>> -> memref<!tpu.dma_semaphore, #tpu.memory_space<semaphore_mem>>
    tpu.wait_dma2 semaphore(%135 : memref<!tpu.dma_semaphore, #tpu.memory_space<semaphore_mem>>) src(%132 : memref<1x128xf32, #tpu.memory_space<any>>) dst(%133 : memref<1x128xf32, #tpu.memory_space<vmem>>)
    %c6_i32_134 = arith.constant 6 : i32
    %c0_i32_135 = arith.constant 0 : i32
    %c0_i32_136 = arith.constant 0 : i32
    %136 = tpu.memref_slice %arg3[%c0_i32_135, %c0_i32_136] : memref<64x128xf32, #tpu.memory_space<any>> -> memref<1x128xf32, #tpu.memory_space<any>>
    %c6_i32_137 = arith.constant 6 : i32
    %c0_i32_138 = arith.constant 0 : i32
    %137 = tpu.memref_slice %arg6[%c6_i32_137, %c0_i32_138] : memref<8x128xf32, #tpu.memory_space<vmem>> -> memref<1x128xf32, #tpu.memory_space<vmem>>
    %138 = tpu.memref_slice %arg8[%c6_i32_134] : memref<8x!tpu.dma_semaphore, #tpu.memory_space<semaphore_mem>> -> memref<1x!tpu.dma_semaphore, #tpu.memory_space<semaphore_mem>>
    %139 = tpu.memref_squeeze %138 : memref<1x!tpu.dma_semaphore, #tpu.memory_space<semaphore_mem>> -> memref<!tpu.dma_semaphore, #tpu.memory_space<semaphore_mem>>
    tpu.wait_dma2 semaphore(%139 : memref<!tpu.dma_semaphore, #tpu.memory_space<semaphore_mem>>) src(%136 : memref<1x128xf32, #tpu.memory_space<any>>) dst(%137 : memref<1x128xf32, #tpu.memory_space<vmem>>)
    %c7_i32_139 = arith.constant 7 : i32
    %c0_i32_140 = arith.constant 0 : i32
    %c0_i32_141 = arith.constant 0 : i32
    %140 = tpu.memref_slice %arg3[%c0_i32_140, %c0_i32_141] : memref<64x128xf32, #tpu.memory_space<any>> -> memref<1x128xf32, #tpu.memory_space<any>>
    %c7_i32_142 = arith.constant 7 : i32
    %c0_i32_143 = arith.constant 0 : i32
    %141 = tpu.memref_slice %arg6[%c7_i32_142, %c0_i32_143] : memref<8x128xf32, #tpu.memory_space<vmem>> -> memref<1x128xf32, #tpu.memory_space<vmem>>
    %142 = tpu.memref_slice %arg8[%c7_i32_139] : memref<8x!tpu.dma_semaphore, #tpu.memory_space<semaphore_mem>> -> memref<1x!tpu.dma_semaphore, #tpu.memory_space<semaphore_mem>>
    %143 = tpu.memref_squeeze %142 : memref<1x!tpu.dma_semaphore, #tpu.memory_space<semaphore_mem>> -> memref<!tpu.dma_semaphore, #tpu.memory_space<semaphore_mem>>
    tpu.wait_dma2 semaphore(%143 : memref<!tpu.dma_semaphore, #tpu.memory_space<semaphore_mem>>) src(%140 : memref<1x128xf32, #tpu.memory_space<any>>) dst(%141 : memref<1x128xf32, #tpu.memory_space<vmem>>)
    %c0_144 = arith.constant 0 : index
    %c0_145 = arith.constant 0 : index
    %144 = vector.load %arg5[%c0_144, %c0_145] : memref<8x128xf32, #tpu.memory_space<vmem>>, vector<8x128xf32>
    %cst = arith.constant 1.000000e+00 : f32
    %145 = vector.broadcast %cst : f32 to vector<8x128xf32>
    %146 = arith.mulf %144, %145 : vector<8x128xf32>
    %cst_146 = arith.constant dense<0xFF800000> : vector<8xf32>
    %147 = vector.multi_reduction <maximumf>, %146, %cst_146 [1] : vector<8x128xf32> to vector<8xf32>
    %148 = vector.shape_cast %147 : vector<8xf32> to vector<8x1xf32>
    %149 = vector.broadcast %148 : vector<8x1xf32> to vector<8x128xf32>
    %150 = arith.subf %146, %149 : vector<8x128xf32>
    %151 = math.exp %150 : vector<8x128xf32>
    %cst_147 = arith.constant dense<0.000000e+00> : vector<8xf32>
    %152 = vector.multi_reduction <add>, %151, %cst_147 [1] : vector<8x128xf32> to vector<8xf32>
    %153 = vector.shape_cast %152 : vector<8xf32> to vector<8x1xf32>
    %154 = tpu.reciprocal %153 : vector<8x1xf32> -> vector<8x1xf32>
    %155 = vector.broadcast %154 : vector<8x1xf32> to vector<8x128xf32>
    %156 = arith.mulf %151, %155 : vector<8x128xf32>
    %c0_148 = arith.constant 0 : index
    %c0_149 = arith.constant 0 : index
    %157 = vector.load %arg6[%c0_148, %c0_149] : memref<8x128xf32, #tpu.memory_space<vmem>>, vector<8x128xf32>
    %cst_150 = arith.constant 1.000000e+00 : f32
    %158 = vector.broadcast %cst_150 : f32 to vector<8x128xf32>
    %159 = arith.mulf %157, %158 : vector<8x128xf32>
    %cst_151 = arith.constant dense<0xFF800000> : vector<8xf32>
    %160 = vector.multi_reduction <maximumf>, %159, %cst_151 [1] : vector<8x128xf32> to vector<8xf32>
    %161 = vector.shape_cast %160 : vector<8xf32> to vector<8x1xf32>
    %162 = vector.broadcast %161 : vector<8x1xf32> to vector<8x128xf32>
    %163 = arith.subf %159, %162 : vector<8x128xf32>
    %164 = math.exp %163 : vector<8x128xf32>
    %cst_152 = arith.constant dense<0.000000e+00> : vector<8xf32>
    %165 = vector.multi_reduction <add>, %164, %cst_152 [1] : vector<8x128xf32> to vector<8xf32>
    %166 = vector.shape_cast %165 : vector<8xf32> to vector<8x1xf32>
    %167 = tpu.reciprocal %166 : vector<8x1xf32> -> vector<8x1xf32>
    %168 = vector.broadcast %167 : vector<8x1xf32> to vector<8x128xf32>
    %169 = arith.mulf %164, %168 : vector<8x128xf32>
    %cst_153 = arith.constant dense<0.000000e+00> : vector<8x8xf32>
    %170 = tpu.matmul %156, %169, %cst_153 {dimension_numbers = #tpu.dot_dimension_numbers<[1], [1], [0], [0], [0, 0, 1, 0], [], []>} : vector<8x128xf32>, vector<8x128xf32>, vector<8x8xf32> -> vector<8x8xf32>
    %cst_154 = arith.constant 9.99999993E-9 : f32
    %171 = vector.broadcast %cst_154 : f32 to vector<8x8xf32>
    %172 = arith.addf %170, %171 : vector<8x8xf32>
    %173 = math.log %172 : vector<8x8xf32>
    %174 = vector.shape_cast %173 : vector<8x8xf32> to vector<1x8x8xf32>
    %cst_155 = arith.constant dense<0.000000e+00> : vector<1xf32>
    %175 = vector.multi_reduction <add>, %174, %cst_155 [1, 2] : vector<1x8x8xf32> to vector<1xf32>
    %176 = vector.shape_cast %175 : vector<1xf32> to vector<1x1x1xf32>
    %177 = vector.extract %176[0, 0, 0] : f32 from vector<1x1x1xf32>
    %cst_156 = arith.constant 6.400000e+01 : f32
    %178 = arith.divf %177, %cst_156 : f32
    %cst_157 = arith.constant 0.000000e+00 : f32
    %179 = arith.subf %cst_157, %178 : f32
    %c0_158 = arith.constant 0 : index
    %c0_159 = arith.constant 0 : index
    %180 = memref.load %arg4[%c0_158, %c0_159] : memref<1x1xf32, #tpu.memory_space<smem>>
    memref.store %179, %arg4[%c0_158, %c0_159] : memref<1x1xf32, #tpu.memory_space<smem>>
    return
  }
  func.func @transform_1(%arg0: i32, %arg1: memref<8xi32, #tpu.memory_space<smem>>, %arg2: memref<8xi32, #tpu.memory_space<smem>>) -> (i32, i32) {
    %c0_i32 = arith.constant 0 : i32
    %c0_i32_0 = arith.constant 0 : i32
    %c0_i32_1 = arith.constant 0 : i32
    return %c0_i32, %c0_i32_0 : i32, i32
  }
}

</mosaic_0001>

<llo_original>
// kernel: tpu_custom_call.1
$region0: #{tpu_custom_call.1}
  #allocation0 [shape = 'u32[]', space=smem, size = 0x4, offset = 0x4, fixed_abs, tag = 'smem constant byte address 0x4 - core index']
  #allocation1 [shape = 'u32[144,128]{1,0:T(1,128)}', space=vmem, size = 0x12000, scoped, tag = 'internal scratch']
  #allocation2 [shape = 'f32[8,128]{1,0:T(8,128)}', space=vmem, size = 0x1000, scoped, tag = 'scratch operand']
  #allocation3 [shape = 'f32[8,128]{1,0:T(8,128)}', space=vmem, size = 0x1000, scoped, tag = 'scratch operand']
  #allocation4 [shape = 's32[8]{0}', space=sflag, size = 0x20, scoped, tag = 'scratch operand']
  #allocation5 [shape = 's32[8]{0}', space=sflag, size = 0x20, scoped, tag = 'scratch operand']
  #allocation6 [shape = 's32[1]{0}', space=sflag, size = 0x4, scoped, tag = 'scoped memory for tpu_custom_call.1']
  #allocation7 [shape = 'u8[512]{0}', space=smem, size = 0x200, scoped, tag = 'prefetched SMEM operand 0']
  #allocation8 [shape = 'u8[512]{0}', space=smem, size = 0x200, scoped, tag = 'prefetched SMEM operand 1']
  #allocation11 [shape = 's32[]', space=sflag, size = 0x4, offset = 0, fixed_abs, tag = 'sflag constant byte address 0x0 - dummy sync flag']
  #allocation12 [shape = 's32[]', space=sflag, size = 0x4, offset = 0, fixed_abs, tag = 'sflag constant byte address 0x0 - dummy sync flag']
  #allocation13 [shape = 'u32[]', space=smem, size = 0x4, offset = 0x44, fixed_abs, tag = 'smem constant byte address 0x44 - assertion arg 0']
  #allocation14 [shape = 'u32[]', space=smem, size = 0x4, offset = 0x48, fixed_abs, tag = 'smem constant byte address 0x48 - assertion arg 1']
  #allocation15 [shape = 's32[]', space=sflag, size = 0x4, offset = 0, fixed_abs, tag = 'sflag constant byte address 0x0 - dummy sync flag']
  #allocation16 [shape = 's32[]', space=sflag, size = 0x4, offset = 0, fixed_abs, tag = 'sflag constant byte address 0x0 - dummy sync flag']
  #allocation17 [shape = 's32[]', space=sflag, size = 0x4, offset = 0, fixed_abs, tag = 'sflag constant byte address 0x0 - dummy sync flag']
  #allocation18 [shape = 's32[]', space=sflag, size = 0x4, offset = 0, fixed_abs, tag = 'sflag constant byte address 0x0 - dummy sync flag']
  #allocation19 [shape = 's32[]', space=sflag, size = 0x4, offset = 0, fixed_abs, tag = 'sflag constant byte address 0x0 - dummy sync flag']
  #allocation20 [shape = 's32[]', space=sflag, size = 0x4, offset = 0, fixed_abs, tag = 'sflag constant byte address 0x0 - dummy sync flag']
  #allocation21 [shape = 's32[]', space=sflag, size = 0x4, offset = 0, fixed_abs, tag = 'sflag constant byte address 0x0 - dummy sync flag']
  #allocation22 [shape = 's32[]', space=sflag, size = 0x4, offset = 0, fixed_abs, tag = 'sflag constant byte address 0x0 - dummy sync flag']
  #allocation23 [shape = 's32[]', space=sflag, size = 0x4, offset = 0, fixed_abs, tag = 'sflag constant byte address 0x0 - dummy sync flag']
  #allocation24 [shape = 's32[]', space=sflag, size = 0x4, offset = 0, fixed_abs, tag = 'sflag constant byte address 0x0 - dummy sync flag']
  #allocation25 [shape = 's32[]', space=sflag, size = 0x4, offset = 0, fixed_abs, tag = 'sflag constant byte address 0x0 - dummy sync flag']
  #allocation26 [shape = 's32[]', space=sflag, size = 0x4, offset = 0, fixed_abs, tag = 'sflag constant byte address 0x0 - dummy sync flag']
  #allocation27 [shape = 's32[]', space=sflag, size = 0x4, offset = 0, fixed_abs, tag = 'sflag constant byte address 0x0 - dummy sync flag']
  #allocation28 [shape = 's32[]', space=sflag, size = 0x4, offset = 0, fixed_abs, tag = 'sflag constant byte address 0x0 - dummy sync flag']
  #allocation29 [shape = 's32[]', space=sflag, size = 0x4, offset = 0, fixed_abs, tag = 'sflag constant byte address 0x0 - dummy sync flag']
  #allocation30 [shape = 's32[]', space=sflag, size = 0x4, offset = 0, fixed_abs, tag = 'sflag constant byte address 0x0 - dummy sync flag']
  #allocation31 [shape = 's32[]', space=sflag, size = 0x4, offset = 0, fixed_abs, tag = 'sflag constant byte address 0x0 - dummy sync flag']
  #allocation32 [shape = 's32[]', space=sflag, size = 0x4, offset = 0, fixed_abs, tag = 'sflag constant byte address 0x0 - dummy sync flag']
  #allocation33 [shape = 's32[]', space=sflag, size = 0x4, offset = 0, fixed_abs, tag = 'sflag constant byte address 0x0 - dummy sync flag']
  #allocation34 [shape = 's32[]', space=sflag, size = 0x4, offset = 0, fixed_abs, tag = 'sflag constant byte address 0x0 - dummy sync flag']
  #allocation35 [shape = 's32[]', space=sflag, size = 0x4, offset = 0, fixed_abs, tag = 'sflag constant byte address 0x0 - dummy sync flag']
  #allocation36 [shape = 's32[]', space=sflag, size = 0x4, offset = 0, fixed_abs, tag = 'sflag constant byte address 0x0 - dummy sync flag']
  #allocation37 [shape = 's32[]', space=sflag, size = 0x4, offset = 0, fixed_abs, tag = 'sflag constant byte address 0x0 - dummy sync flag']
  #allocation38 [shape = 's32[]', space=sflag, size = 0x4, offset = 0, fixed_abs, tag = 'sflag constant byte address 0x0 - dummy sync flag']
  #allocation39 [shape = 's32[]', space=sflag, size = 0x4, offset = 0, fixed_abs, tag = 'sflag constant byte address 0x0 - dummy sync flag']
  #allocation40 [shape = 's32[]', space=sflag, size = 0x4, offset = 0, fixed_abs, tag = 'sflag constant byte address 0x0 - dummy sync flag']
  #allocation41 [shape = 's32[]', space=sflag, size = 0x4, offset = 0, fixed_abs, tag = 'sflag constant byte address 0x0 - dummy sync flag']
  #allocation42 [shape = 's32[]', space=sflag, size = 0x4, offset = 0, fixed_abs, tag = 'sflag constant byte address 0x0 - dummy sync flag']
  #allocation43 [shape = 's32[]', space=sflag, size = 0x4, offset = 0, fixed_abs, tag = 'sflag constant byte address 0x0 - dummy sync flag']
  #allocation44 [shape = 's32[]', space=sflag, size = 0x4, offset = 0, fixed_abs, tag = 'sflag constant byte address 0x0 - dummy sync flag']
  %s0 = inlined_call_operand.hbm [shape: s32[8], index: 0, kind: input, shape index: {}]
  %s1 = inlined_call_operand.vmem [shape: s32[8], index: 1, kind: input, shape index: {}]
  %s2 = inlined_call_operand.hbm [shape: f32[64,128], index: 2, kind: input, shape index: {}]
  %s3 = inlined_call_operand.hbm [shape: f32[1,1], index: 3, kind: output, shape index: {}]
  %s4 = sld [smem:[#allocation0]]
  $region74: #{tpu_custom_call.1} parent=0
    _
  %s6 = ssub.s32 1, %s4
  %s7 = scalar_select 0, %s6, %s4
  %9 = dma.hbm_to_smem %s0, 16, [#allocation7], [#allocation6]
  %s10 = sshll.u32 %s1, 4
  %s11 = int_to_ptr.vmem [resolvable:$true] %s10
  %13 = dma.vmem_to_smem %s11, 16, [#allocation8], [#allocation6]
  %14 = dma.done [#allocation6], 32
  %15 = sfence
  $region1: #{tpu_custom_call.1} parent=0
    #allocation9 [shape = 'u8[512]{0}', space=smem, size = 0x200, scoped, tag = 'output window, operand 0, single buffered']
    #allocation10 [shape = 's32[1]{0}', space=sflag, size = 0x4, scoped, tag = 'scoped memory for tpu_custom_call.1']
    %16 = vsyncpa [#allocation10], 0
    %s17 = sld [smem:[#allocation7]]
    %s18 = smul.addr %s17, 16
    %s19 = scalar_lea.hbm %s2, %s18
    // Predicated region
    $region2: #{tpu_custom_call.1} parent=1 // pred_check
      _
    $region3: #{tpu_custom_call.1} parent=1 // pred_check_branch
      %21 = sbr.rel target = $region5
    $region4: #{tpu_custom_call.1} parent=1 // pred_region
      %22 = sst [smem:[#allocation13]] [#allocation12]
      %23 = sst [smem:[#allocation14]] [#allocation11]
    $region5: #{tpu_custom_call.1} parent=1 // pred_fallthru
      _
    %25 = shalt.err (0)
    %s27 = sshll.u32 [#allocation2], 4
    %s28 = int_to_ptr.vmem [resolvable:$true] %s27
    %30 = dma.hbm_to_vmem [thread:$0]  %s19, 16, %s28, [#allocation4]
    %s31 = sld [smem:[#allocation7 + $0x1]]
    %s32 = smul.addr %s31, 16
    %s33 = scalar_lea.hbm %s2, %s32
    %s34 = scalar_lea.vmem [#allocation2], 1
    %s35 = scalar_lea.sflag [#allocation4], 1
    // Predicated region
    $region6: #{tpu_custom_call.1} parent=1 // pred_check
      _
    $region7: #{tpu_custom_call.1} parent=1 // pred_check_branch
      %37 = sbr.rel target = $region9
    $region8: #{tpu_custom_call.1} parent=1 // pred_region
      %38 = sst [smem:[#allocation13]] [#allocation16]
      %39 = sst [smem:[#allocation14]] [#allocation15]
    $region9: #{tpu_custom_call.1} parent=1 // pred_fallthru
      _
    %41 = shalt.err (0)
    %s43 = sshll.u32 %s34, 4
    %s44 = int_to_ptr.vmem [resolvable:$true] %s43
    %46 = dma.hbm_to_vmem [thread:$0]  %s33, 16, %s44, %s35
    %s47 = sld [smem:[#allocation7 + $0x2]]
    %s48 = smul.addr %s47, 16
    %s49 = scalar_lea.hbm %s2, %s48
    %s50 = scalar_lea.vmem [#allocation2], 2
    %s51 = scalar_lea.sflag [#allocation4], 2
    // Predicated region
    $region10: #{tpu_custom_call.1} parent=1 // pred_check
      _
    $region11: #{tpu_custom_call.1} parent=1 // pred_check_branch
      %53 = sbr.rel target = $region13
    $region12: #{tpu_custom_call.1} parent=1 // pred_region
      %54 = sst [smem:[#allocation13]] [#allocation18]
      %55 = sst [smem:[#allocation14]] [#allocation17]
    $region13: #{tpu_custom_call.1} parent=1 // pred_fallthru
      _
    %57 = shalt.err (0)
    %s59 = sshll.u32 %s50, 4
    %s60 = int_to_ptr.vmem [resolvable:$true] %s59
    %62 = dma.hbm_to_vmem [thread:$0]  %s49, 16, %s60, %s51
    %s63 = sld [smem:[#allocation7 + $0x3]]
    %s64 = smul.addr %s63, 16
    %s65 = scalar_lea.hbm %s2, %s64
    %s66 = scalar_lea.vmem [#allocation2], 3
    %s67 = scalar_lea.sflag [#allocation4], 3
    // Predicated region
    $region14: #{tpu_custom_call.1} parent=1 // pred_check
      _
    $region15: #{tpu_custom_call.1} parent=1 // pred_check_branch
      %69 = sbr.rel target = $region17
    $region16: #{tpu_custom_call.1} parent=1 // pred_region
      %70 = sst [smem:[#allocation13]] [#allocation20]
      %71 = sst [smem:[#allocation14]] [#allocation19]
    $region17: #{tpu_custom_call.1} parent=1 // pred_fallthru
      _
    %73 = shalt.err (0)
    %s75 = sshll.u32 %s66, 4
    %s76 = int_to_ptr.vmem [resolvable:$true] %s75
    %78 = dma.hbm_to_vmem [thread:$0]  %s65, 16, %s76, %s67
    %s79 = sld [smem:[#allocation7 + $0x4]]
    %s80 = smul.addr %s79, 16
    %s81 = scalar_lea.hbm %s2, %s80
    %s82 = scalar_lea.vmem [#allocation2], 4
    %s83 = scalar_lea.sflag [#allocation4], 4
    // Predicated region
    $region18: #{tpu_custom_call.1} parent=1 // pred_check
      _
    $region19: #{tpu_custom_call.1} parent=1 // pred_check_branch
      %85 = sbr.rel target = $region21
    $region20: #{tpu_custom_call.1} parent=1 // pred_region
      %86 = sst [smem:[#allocation13]] [#allocation22]
      %87 = sst [smem:[#allocation14]] [#allocation21]
    $region21: #{tpu_custom_call.1} parent=1 // pred_fallthru
      _
    %89 = shalt.err (0)
    %s91 = sshll.u32 %s82, 4
    %s92 = int_to_ptr.vmem [resolvable:$true] %s91
    %94 = dma.hbm_to_vmem [thread:$0]  %s81, 16, %s92, %s83
    %s95 = sld [smem:[#allocation7 + $0x5]]
    %s96 = smul.addr %s95, 16
    %s97 = scalar_lea.hbm %s2, %s96
    %s98 = scalar_lea.vmem [#allocation2], 5
    %s99 = scalar_lea.sflag [#allocation4], 5
    // Predicated region
    $region22: #{tpu_custom_call.1} parent=1 // pred_check
      _
    $region23: #{tpu_custom_call.1} parent=1 // pred_check_branch
      %101 = sbr.rel target = $region25
    $region24: #{tpu_custom_call.1} parent=1 // pred_region
      %102 = sst [smem:[#allocation13]] [#allocation24]
      %103 = sst [smem:[#allocation14]] [#allocation23]
    $region25: #{tpu_custom_call.1} parent=1 // pred_fallthru
      _
    %105 = shalt.err (0)
    %s107 = sshll.u32 %s98, 4
    %s108 = int_to_ptr.vmem [resolvable:$true] %s107
    %110 = dma.hbm_to_vmem [thread:$0]  %s97, 16, %s108, %s99
    %s111 = sld [smem:[#allocation7 + $0x6]]
    %s112 = smul.addr %s111, 16
    %s113 = scalar_lea.hbm %s2, %s112
    %s114 = scalar_lea.vmem [#allocation2], 6
    %s115 = scalar_lea.sflag [#allocation4], 6
    // Predicated region
    $region26: #{tpu_custom_call.1} parent=1 // pred_check
      _
    $region27: #{tpu_custom_call.1} parent=1 // pred_check_branch
      %117 = sbr.rel target = $region29
    $region28: #{tpu_custom_call.1} parent=1 // pred_region
      %118 = sst [smem:[#allocation13]] [#allocation26]
      %119 = sst [smem:[#allocation14]] [#allocation25]
    $region29: #{tpu_custom_call.1} parent=1 // pred_fallthru
      _
    %121 = shalt.err (0)
    %s123 = sshll.u32 %s114, 4
    %s124 = int_to_ptr.vmem [resolvable:$true] %s123
    %126 = dma.hbm_to_vmem [thread:$0]  %s113, 16, %s124, %s115
    %s127 = sld [smem:[#allocation7 + $0x7]]
    %s128 = smul.addr %s127, 16
    %s129 = scalar_lea.hbm %s2, %s128
    %s130 = scalar_lea.vmem [#allocation2], 7
    %s131 = scalar_lea.sflag [#allocation4], 7
    // Predicated region
    $region30: #{tpu_custom_call.1} parent=1 // pred_check
      _
    $region31: #{tpu_custom_call.1} parent=1 // pred_check_branch
      %133 = sbr.rel target = $region33
    $region32: #{tpu_custom_call.1} parent=1 // pred_region
      %134 = sst [smem:[#allocation13]] [#allocation28]
      %135 = sst [smem:[#allocation14]] [#allocation27]
    $region33: #{tpu_custom_call.1} parent=1 // pred_fallthru
      _
    %137 = shalt.err (0)
    %s139 = sshll.u32 %s130, 4
    %s140 = int_to_ptr.vmem [resolvable:$true] %s139
    %142 = dma.hbm_to_vmem [thread:$0]  %s129, 16, %s140, %s131
    %s143 = sld [smem:[#allocation8]]
    %s144 = smul.addr %s143, 16
    %s145 = scalar_lea.hbm %s2, %s144
    // Predicated region
    $region34: #{tpu_custom_call.1} parent=1 // pred_check
      _
    $region35: #{tpu_custom_call.1} parent=1 // pred_check_branch
      %147 = sbr.rel target = $region37
    $region36: #{tpu_custom_call.1} parent=1 // pred_region
      %148 = sst [smem:[#allocation13]] [#allocation30]
      %149 = sst [smem:[#allocation14]] [#allocation29]
    $region37: #{tpu_custom_call.1} parent=1 // pred_fallthru
      _
    %151 = shalt.err (0)
    %s153 = sshll.u32 [#allocation3], 4
    %s154 = int_to_ptr.vmem [resolvable:$true] %s153
    %156 = dma.hbm_to_vmem [thread:$0]  %s145, 16, %s154, [#allocation5]
    %s157 = sld [smem:[#allocation8 + $0x1]]
    %s158 = smul.addr %s157, 16
    %s159 = scalar_lea.hbm %s2, %s158
    %s160 = scalar_lea.vmem [#allocation3], 1
    %s161 = scalar_lea.sflag [#allocation5], 1
    // Predicated region
    $region38: #{tpu_custom_call.1} parent=1 // pred_check
      _
    $region39: #{tpu_custom_call.1} parent=1 // pred_check_branch
      %163 = sbr.rel target = $region41
    $region40: #{tpu_custom_call.1} parent=1 // pred_region
      %164 = sst [smem:[#allocation13]] [#allocation32]
      %165 = sst [smem:[#allocation14]] [#allocation31]
    $region41: #{tpu_custom_call.1} parent=1 // pred_fallthru
      _
    %167 = shalt.err (0)
    %s169 = sshll.u32 %s160, 4
    %s170 = int_to_ptr.vmem [resolvable:$true] %s169
    %172 = dma.hbm_to_vmem [thread:$0]  %s159, 16, %s170, %s161
    %s173 = sld [smem:[#allocation8 + $0x2]]
    %s174 = smul.addr %s173, 16
    %s175 = scalar_lea.hbm %s2, %s174
    %s176 = scalar_lea.vmem [#allocation3], 2
    %s177 = scalar_lea.sflag [#allocation5], 2
    // Predicated region
    $region42: #{tpu_custom_call.1} parent=1 // pred_check
      _
    $region43: #{tpu_custom_call.1} parent=1 // pred_check_branch
      %179 = sbr.rel target = $region45
    $region44: #{tpu_custom_call.1} parent=1 // pred_region
      %180 = sst [smem:[#allocation13]] [#allocation34]
      %181 = sst [smem:[#allocation14]] [#allocation33]
    $region45: #{tpu_custom_call.1} parent=1 // pred_fallthru
      _
    %183 = shalt.err (0)
    %s185 = sshll.u32 %s176, 4
    %s186 = int_to_ptr.vmem [resolvable:$true] %s185
    %188 = dma.hbm_to_vmem [thread:$0]  %s175, 16, %s186, %s177
    %s189 = sld [smem:[#allocation8 + $0x3]]
    %s190 = smul.addr %s189, 16
    %s191 = scalar_lea.hbm %s2, %s190
    %s192 = scalar_lea.vmem [#allocation3], 3
    %s193 = scalar_lea.sflag [#allocation5], 3
    // Predicated region
    $region46: #{tpu_custom_call.1} parent=1 // pred_check
      _
    $region47: #{tpu_custom_call.1} parent=1 // pred_check_branch
      %195 = sbr.rel target = $region49
    $region48: #{tpu_custom_call.1} parent=1 // pred_region
      %196 = sst [smem:[#allocation13]] [#allocation36]
      %197 = sst [smem:[#allocation14]] [#allocation35]
    $region49: #{tpu_custom_call.1} parent=1 // pred_fallthru
      _
    %199 = shalt.err (0)
    %s201 = sshll.u32 %s192, 4
    %s202 = int_to_ptr.vmem [resolvable:$true] %s201
    %204 = dma.hbm_to_vmem [thread:$0]  %s191, 16, %s202, %s193
    %s205 = sld [smem:[#allocation8 + $0x4]]
    %s206 = smul.addr %s205, 16
    %s207 = scalar_lea.hbm %s2, %s206
    %s208 = scalar_lea.vmem [#allocation3], 4
    %s209 = scalar_lea.sflag [#allocation5], 4
    // Predicated region
    $region50: #{tpu_custom_call.1} parent=1 // pred_check
      _
    $region51: #{tpu_custom_call.1} parent=1 // pred_check_branch
      %211 = sbr.rel target = $region53
    $region52: #{tpu_custom_call.1} parent=1 // pred_region
      %212 = sst [smem:[#allocation13]] [#allocation38]
      %213 = sst [smem:[#allocation14]] [#allocation37]
    $region53: #{tpu_custom_call.1} parent=1 // pred_fallthru
      _
    %215 = shalt.err (0)
    %s217 = sshll.u32 %s208, 4
    %s218 = int_to_ptr.vmem [resolvable:$true] %s217
    %220 = dma.hbm_to_vmem [thread:$0]  %s207, 16, %s218, %s209
    %s221 = sld [smem:[#allocation8 + $0x5]]
    %s222 = smul.addr %s221, 16
    %s223 = scalar_lea.hbm %s2, %s222
    %s224 = scalar_lea.vmem [#allocation3], 5
    %s225 = scalar_lea.sflag [#allocation5], 5
    // Predicated region
    $region54: #{tpu_custom_call.1} parent=1 // pred_check
      _
    $region55: #{tpu_custom_call.1} parent=1 // pred_check_branch
      %227 = sbr.rel target = $region57
    $region56: #{tpu_custom_call.1} parent=1 // pred_region
      %228 = sst [smem:[#allocation13]] [#allocation40]
      %229 = sst [smem:[#allocation14]] [#allocation39]
    $region57: #{tpu_custom_call.1} parent=1 // pred_fallthru
      _
    %231 = shalt.err (0)
    %s233 = sshll.u32 %s224, 4
    %s234 = int_to_ptr.vmem [resolvable:$true] %s233
    %236 = dma.hbm_to_vmem [thread:$0]  %s223, 16, %s234, %s225
    %s237 = sld [smem:[#allocation8 + $0x6]]
    %s238 = smul.addr %s237, 16
    %s239 = scalar_lea.hbm %s2, %s238
    %s240 = scalar_lea.vmem [#allocation3], 6
    %s241 = scalar_lea.sflag [#allocation5], 6
    // Predicated region
    $region58: #{tpu_custom_call.1} parent=1 // pred_check
      _
    $region59: #{tpu_custom_call.1} parent=1 // pred_check_branch
      %243 = sbr.rel target = $region61
    $region60: #{tpu_custom_call.1} parent=1 // pred_region
      %244 = sst [smem:[#allocation13]] [#allocation42]
      %245 = sst [smem:[#allocation14]] [#allocation41]
    $region61: #{tpu_custom_call.1} parent=1 // pred_fallthru
      _
    %247 = shalt.err (0)
    %s249 = sshll.u32 %s240, 4
    %s250 = int_to_ptr.vmem [resolvable:$true] %s249
    %252 = dma.hbm_to_vmem [thread:$0]  %s239, 16, %s250, %s241
    %s253 = sld [smem:[#allocation8 + $0x7]]
    %s254 = smul.addr %s253, 16
    %s255 = scalar_lea.hbm %s2, %s254
    %s256 = scalar_lea.vmem [#allocation3], 7
    %s257 = scalar_lea.sflag [#allocation5], 7
    // Predicated region
    $region62: #{tpu_custom_call.1} parent=1 // pred_check
      _
    $region63: #{tpu_custom_call.1} parent=1 // pred_check_branch
      %259 = sbr.rel target = $region65
    $region64: #{tpu_custom_call.1} parent=1 // pred_region
      %260 = sst [smem:[#allocation13]] [#allocation44]
      %261 = sst [smem:[#allocation14]] [#allocation43]
    $region65: #{tpu_custom_call.1} parent=1 // pred_fallthru
      _
    %263 = shalt.err (0)
    %s265 = sshll.u32 %s256, 4
    %s266 = int_to_ptr.vmem [resolvable:$true] %s265
    %268 = dma.hbm_to_vmem [thread:$0]  %s255, 16, %s266, %s257
    %s269 = smul.u32 1, 1
    %s270 = sshll.u32 %s269, 4
    %271 = dma.done [#allocation4], %s270
    %s272 = sshll.u32 %s269, 4
    %273 = dma.done %s35, %s272
    %s274 = sshll.u32 %s269, 4
    %275 = dma.done %s51, %s274
    %s276 = sshll.u32 %s269, 4
    %277 = dma.done %s67, %s276
    %s278 = sshll.u32 %s269, 4
    %279 = dma.done %s83, %s278
    %s280 = sshll.u32 %s269, 4
    %281 = dma.done %s99, %s280
    %s282 = sshll.u32 %s269, 4
    %283 = dma.done %s115, %s282
    %s284 = sshll.u32 %s269, 4
    %285 = dma.done %s131, %s284
    %s286 = sshll.u32 %s269, 4
    %287 = dma.done [#allocation5], %s286
    %s288 = sshll.u32 %s269, 4
    %289 = dma.done %s161, %s288
    %s290 = sshll.u32 %s269, 4
    %291 = dma.done %s177, %s290
    %s292 = sshll.u32 %s269, 4
    %293 = dma.done %s193, %s292
    %s294 = sshll.u32 %s269, 4
    %295 = dma.done %s209, %s294
    %s296 = sshll.u32 %s269, 4
    %297 = dma.done %s225, %s296
    %s298 = sshll.u32 %s269, 4
    %299 = dma.done %s241, %s298
    %s300 = sshll.u32 %s269, 4
    %301 = dma.done %s257, %s300
    %v302 = vld [vmem:[#allocation2] sm:$0xff]
    %303 = vmax.xlane.f32.xlu0 %v302
    %v304 = vpop.xlane.xlu0 %303
    %v305 = vsub.f32 %v302, %v304
    %v306 = vmul.f32 %v305, 1.442695
    %v307 = vpow.pop %v306
    %308 = vadd.xlane.f32.xlu0 %v307
    %v309 = vpop.xlane.xlu0 %308
    %v310 = vrcp.pop %v309
    %v311 = vmul.f32 %v307, %v310
    %v312 = vld [vmem:[#allocation3] sm:$0xff]
    %313 = vmax.xlane.f32.xlu0 %v312
    %v314 = vpop.xlane.xlu0 %313
    %v315 = vsub.f32 %v312, %v314
    %v316 = vmul.f32 %v315, 1.442695
    %v317 = vpow.pop %v316
    %318 = vadd.xlane.f32.xlu0 %v317
    %v319 = vpop.xlane.xlu0 %318
    %v320 = vrcp.pop %v319
    %v321 = vmul.f32 %v317, %v320
    %322 = vmatprep.subr.mxu0 0.0
    %323 = vmatpush1.xpose.msra.mxu0 %v321
    %324 = vmatprep.subr.mxu0 0.0
    %325 = vmatpush1.xpose.msra.mxu0 0.0
    %326 = vmatprep.subr.mxu0 0.0
    %327 = vmatpush1.xpose.msra.mxu0 0.0
    %328 = vmatprep.subr.mxu0 0.0
    %329 = vmatpush1.xpose.msra.mxu0 0.0
    %330 = vmatprep.subr.mxu0 0.0
    %331 = vmatpush1.xpose.msra.mxu0 0.0
    %332 = vmatprep.subr.mxu0 0.0
    %333 = vmatpush1.xpose.msra.mxu0 0.0
    %334 = vmatprep.subr.mxu0 0.0
    %335 = vmatpush1.xpose.msra.mxu0 0.0
    %336 = vmatprep.subr.mxu0 0.0
    %337 = vmatpush1.xpose.msra.mxu0 0.0
    %338 = vmatprep.subr.mxu0 0.0
    %339 = vmatpush1.xpose.msra.mxu0 0.0
    %340 = vmatprep.subr.mxu0 0.0
    %341 = vmatpush1.xpose.msra.mxu0 0.0
    %342 = vmatprep.subr.mxu0 0.0
    %343 = vmatpush1.xpose.msra.mxu0 0.0
    %344 = vmatprep.subr.mxu0 0.0
    %345 = vmatpush1.xpose.msra.mxu0 0.0
    %346 = vmatprep.subr.mxu0 0.0
    %347 = vmatpush1.xpose.msra.mxu0 0.0
    %348 = vmatprep.subr.mxu0 0.0
    %349 = vmatpush1.xpose.msra.mxu0 0.0
    %350 = vmatprep.subr.mxu0 0.0
    %351 = vmatpush1.xpose.msra.mxu0 0.0
    %352 = vmatprep.subr.mxu0 0.0
    %353 = vmatpush1.xpose.msra.mxu0 0.0
    %354 = vmatprep.subr.mxu0 0.0
    %355 = vmatpush1.xpose.msra.mxu0 0.0
    %356 = vmatprep.subr.mxu0 0.0
    %357 = vmatpush1.xpose.msra.mxu0 0.0
    %358 = vmatprep.subr.mxu0 0.0
    %359 = vmatpush1.xpose.msra.mxu0 0.0
    %360 = vmatprep.subr.mxu0 0.0
    %361 = vmatpush1.xpose.msra.mxu0 0.0
    %362 = vmatprep.subr.mxu0 0.0
    %363 = vmatpush1.xpose.msra.mxu0 0.0
    %364 = vmatprep.subr.mxu0 0.0
    %365 = vmatpush1.xpose.msra.mxu0 0.0
    %366 = vmatprep.subr.mxu0 0.0
    %367 = vmatpush1.xpose.msra.mxu0 0.0
    %368 = vmatprep.subr.mxu0 0.0
    %369 = vmatpush1.xpose.msra.mxu0 0.0
    %370 = vmatprep.subr.mxu0 0.0
    %371 = vmatpush1.xpose.msra.mxu0 0.0
    %372 = vmatprep.subr.mxu0 0.0
    %373 = vmatpush1.xpose.msra.mxu0 0.0
    %374 = vmatprep.subr.mxu0 0.0
    %375 = vmatpush1.xpose.msra.mxu0 0.0
    %376 = vmatprep.subr.mxu0 0.0
    %377 = vmatpush1.xpose.msra.mxu0 0.0
    %378 = vmatprep.subr.mxu0 0.0
    %379 = vmatpush1.xpose.msra.mxu0 0.0
    %380 = vmatprep.subr.mxu0 0.0
    %381 = vmatpush1.xpose.msra.mxu0 0.0
    %382 = vmatprep.subr.mxu0 0.0
    %383 = vmatpush1.xpose.msra.mxu0 0.0
    %384 = vmatprep.subr.mxu0 0.0
    %385 = vmatpush1.xpose.msra.mxu0 0.0
    %386 = vmatprep.mubr.f32.mxu0 0.0
    %387 = vmatmul.mubr.f32.gmra.mrb[0].mxu0 %v311
    %v388 = vpop.f32.mrb[0].mxu0
    %v389 = vadd.f32 1e-08, %v388
    %v390 = vpop.f32.mrb[0].mxu0
    %391 = vdwg.mxu0
    %v392 = vlog2.pop %v389
    %v393 = vmul.f32 %v392, 0.6931472
    %vm394 = vcmask 64512
    %v395 = vsel %vm394, %v393, 0.0
    %396 = vadd.xlane.f32.xlu0 %v395
    %v397 = vpop.xlane.xlu0 %396
    %v398 = vrot.slane %v397, 4
    %v399 = vadd.f32 %v397, %v398
    %v400 = vrot.slane %v399, 2
    %v401 = vadd.f32 %v399, %v400
    %v402 = vrot.slane %v401, 1
    %v403 = vadd.f32 %v401, %v402
    %s404 = vtos %v403
    %v405 = vrcp.pop 64.0
    %s406 = vtos %v405
    %s407 = smul.f32 %s404, %s406
    %s408 = ssub.f32 0.0, %s407
    %s409 = scalar_lea.smem [#allocation9], 0
    %410 = sst [smem:[%s409]] %s408
    // Predicated region
    $region66: #{tpu_custom_call.1} parent=1 // pred_check
      _
    $region67: #{tpu_custom_call.1} parent=1 // pred_check_branch
      %412 = sbr.rel (0) target = $region69
    $region68: #{tpu_custom_call.1} parent=1 // pred_region
      %s414 = ssub.s32 16, 16
      %415 = vsyncadd [#allocation10], %s414
      %418 = dma.smem_to_hbm [#allocation9], 16, %s3, [#allocation10]
    $region69: #{tpu_custom_call.1} parent=1 // pred_fallthru
      _
    // Predicated region
    $region70: #{tpu_custom_call.1} parent=1 // pred_check
      _
    $region71: #{tpu_custom_call.1} parent=1 // pred_check_branch
      %420 = sbr.rel (0) target = $region73
    $region72: #{tpu_custom_call.1} parent=1 // pred_region
      %421 = dma.done [#allocation10], 16
    $region73: #{tpu_custom_call.1} parent=1 // pred_fallthru
      _
    %422 = sfence
    %423 = vsyncpa [#allocation10], 1
  %424 = vsyncmov [#allocation4]
  %s425 = vpop.sfrf %424
  %p426 = scmp.eq.s32.totalorder %s425, 0
  %p427 = pneg %p426
  %429 = shalt.err (%p427)
  %s430 = scalar_lea.sflag [#allocation4], 1
  %431 = vsyncmov %s430
  %s432 = vpop.sfrf %431
  %p433 = scmp.eq.s32.totalorder %s432, 0
  %p434 = pneg %p433
  %436 = shalt.err (%p434)
  %s437 = scalar_lea.sflag [#allocation4], 2
  %438 = vsyncmov %s437
  %s439 = vpop.sfrf %438
  %p440 = scmp.eq.s32.totalorder %s439, 0
  %p441 = pneg %p440
  %443 = shalt.err (%p441)
  %s444 = scalar_lea.sflag [#allocation4], 3
  %445 = vsyncmov %s444
  %s446 = vpop.sfrf %445
  %p447 = scmp.eq.s32.totalorder %s446, 0
  %p448 = pneg %p447
  %450 = shalt.err (%p448)
  %s451 = scalar_lea.sflag [#allocation4], 4
  %452 = vsyncmov %s451
  %s453 = vpop.sfrf %452
  %p454 = scmp.eq.s32.totalorder %s453, 0
  %p455 = pneg %p454
  %457 = shalt.err (%p455)
  %s458 = scalar_lea.sflag [#allocation4], 5
  %459 = vsyncmov %s458
  %s460 = vpop.sfrf %459
  %p461 = scmp.eq.s32.totalorder %s460, 0
  %p462 = pneg %p461
  %464 = shalt.err (%p462)
  %s465 = scalar_lea.sflag [#allocation4], 6
  %466 = vsyncmov %s465
  %s467 = vpop.sfrf %466
  %p468 = scmp.eq.s32.totalorder %s467, 0
  %p469 = pneg %p468
  %471 = shalt.err (%p469)
  %s472 = scalar_lea.sflag [#allocation4], 7
  %473 = vsyncmov %s472
  %s474 = vpop.sfrf %473
  %p475 = scmp.eq.s32.totalorder %s474, 0
  %p476 = pneg %p475
  %478 = shalt.err (%p476)
  %479 = vsyncmov [#allocation5]
  %s480 = vpop.sfrf %479
  %p481 = scmp.eq.s32.totalorder %s480, 0
  %p482 = pneg %p481
  %484 = shalt.err (%p482)
  %s485 = scalar_lea.sflag [#allocation5], 1
  %486 = vsyncmov %s485
  %s487 = vpop.sfrf %486
  %p488 = scmp.eq.s32.totalorder %s487, 0
  %p489 = pneg %p488
  %491 = shalt.err (%p489)
  %s492 = scalar_lea.sflag [#allocation5], 2
  %493 = vsyncmov %s492
  %s494 = vpop.sfrf %493
  %p495 = scmp.eq.s32.totalorder %s494, 0
  %p496 = pneg %p495
  %498 = shalt.err (%p496)
  %s499 = scalar_lea.sflag [#allocation5], 3
  %500 = vsyncmov %s499
  %s501 = vpop.sfrf %500
  %p502 = scmp.eq.s32.totalorder %s501, 0
  %p503 = pneg %p502
  %505 = shalt.err (%p503)
  %s506 = scalar_lea.sflag [#allocation5], 4
  %507 = vsyncmov %s506
  %s508 = vpop.sfrf %507
  %p509 = scmp.eq.s32.totalorder %s508, 0
  %p510 = pneg %p509
  %512 = shalt.err (%p510)
  %s513 = scalar_lea.sflag [#allocation5], 5
  %514 = vsyncmov %s513
  %s515 = vpop.sfrf %514
  %p516 = scmp.eq.s32.totalorder %s515, 0
  %p517 = pneg %p516
  %519 = shalt.err (%p517)
  %s520 = scalar_lea.sflag [#allocation5], 6
  %521 = vsyncmov %s520
  %s522 = vpop.sfrf %521
  %p523 = scmp.eq.s32.totalorder %s522, 0
  %p524 = pneg %p523
  %526 = shalt.err (%p524)
  %s527 = scalar_lea.sflag [#allocation5], 7
  %528 = vsyncmov %s527
  %s529 = vpop.sfrf %528
  %p530 = scmp.eq.s32.totalorder %s529, 0
  %p531 = pneg %p530
  %533 = shalt.err (%p531)

</llo_original>
